<compile_context>
chip_gen: v7x
topology: tpu7x:2x2x1
jax: 0.10.0
libtpu: 0.0.40
codegen_flags: <defaults>
</compile_context>

<pallas_src>
import functools

import jax
import jax.numpy as jnp
from jax.experimental import pallas as pl
from jax.experimental.pallas import tpu as pltpu

_LANE = 128           # lane tile (last dim)
_SUBLANE_BF16 = 16    # bf16 sublane packing (rows per packed vreg)
_IGNORE_INDEX = -100  # torch.nn.CrossEntropyLoss default


def _round_up(x, m):
    return (x + m - 1) // m * m


def _default_b_tile(batch):
    """Generation-gated batch tile: 256 on v6e/v7x, 128 otherwise (v5e),
    clamped down for tiny batches (always a multiple of 16 for bf16 packing)."""
    try:
        kind = jax.devices()[0].device_kind.lower()
    except Exception:  # pragma: no cover - defensive
        kind = ""
    gen_default = 256 if ("v6" in kind or "v7" in kind) else 128
    return min(gen_default, _round_up(max(batch, 1), _SUBLANE_BF16))


def _vmem_limit_bytes(b_tile, h_pad, l_pad):
    bf16, f32 = 2, 4
    streamed = b_tile * h_pad * bf16 + b_tile * 4                 # cls tile + labels
    resident = (h_pad * h_pad * bf16 + h_pad * f32                # pooler W, b
                + h_pad * l_pad * bf16 + l_pad * f32)             # classifier W^T, b
    outs = b_tile * l_pad * f32 + 2 * b_tile * f32                # logits, perex, valid
    total = 2 * (streamed + resident + outs) + (4 << 20)          # double-buffer + slack
    return int(min(max(total, 32 << 20), 64 << 20))


def _fused_pooler_classifier_ce_kernel(
    cls_ref,       # [Bt, Hp] bf16  CLS-token embeddings (batch tile, streamed)
    pw_ref,        # [Hp, Hp] bf16  pooler weight (resident)
    pb_ref,        # [1,  Hp] f32   pooler bias
    cwT_ref,       # [Hp, Lp] bf16  classifier weight, pre-transposed host-side
    cb_ref,        # [1,  Lp] f32   classifier bias
    labels_ref,    # [Bt, 1]  i32   labels (pad rows = ignore_index)
    logits_ref,    # [Bt, Lp] f32   OUT: lane-dense logits tile
    perex_ref,     # [Bt, 1]  f32   OUT: per-example CE (0 where invalid)
    valid_ref,     # [Bt, 1]  f32   OUT: 1.0 where target counted, else 0.0
    *,
    num_labels: int,
    batch: int,
    b_tile: int,
):
    i = pl.program_id(0)

    # --- fused language-model pooler: pooled = tanh(cls @ Wp + bp) ----------
    # bf16 MXU operands, f32 accumulation; tanh on the EUP in f32.
    pooled = jnp.tanh(
        jnp.dot(cls_ref[...], pw_ref[...],
                preferred_element_type=jnp.float32) + pb_ref[...])

    # --- classifier: logits = pooled @ W.T + b (W.T pre-materialized) --------
    logits = jnp.dot(pooled.astype(jnp.bfloat16), cwT_ref[...],
                     preferred_element_type=jnp.float32) + cb_ref[...]
    logits_ref[...] = logits  # unmasked lane-dense store (Lp multiple of 128)

    # --- numerically-stable cross entropy over the real label columns -------
    bt, lp = logits.shape
    col = jax.lax.broadcasted_iota(jnp.int32, (bt, lp), 1)
    if num_labels != lp:
        masked = jnp.where(col < num_labels, logits, -jnp.inf)   # pad cols -> -inf
    else:
        masked = logits                                          # compile-time skip
    m = jnp.max(masked, axis=-1, keepdims=True)                  # [Bt, 1]
    lse = m + jnp.log(jnp.sum(jnp.exp(masked - m), axis=-1, keepdims=True))

    labels = labels_ref[...]                                     # [Bt, 1]
    # NOTE: out-of-range labels (!= -100) are not detected here; torch raises.
    picked = jnp.sum(jnp.where(col == labels, logits, 0.0),
                     axis=-1, keepdims=True)                     # [Bt, 1]

    row = jax.lax.broadcasted_iota(jnp.int32, (bt, 1), 0) + i * b_tile
    valid = jnp.logical_and(row < batch, labels != _IGNORE_INDEX)

    perex_ref[...] = jnp.where(valid, lse - picked, 0.0)
    valid_ref[...] = valid.astype(jnp.float32)


def prepare_classifier_params(pooler_w, pooler_b, cls_weight, cls_bias):
    """One-time (hoisted) weight prep: pad to lane-aligned shapes, cast MXU
    operands to bf16, and pre-transpose the classifier weight to [H, L]."""
    H = pooler_w.shape[0]
    L = cls_weight.shape[0]
    h_pad = _round_up(H, _LANE)
    l_pad = _round_up(L, _LANE)

    pw_p = jnp.zeros((h_pad, h_pad), jnp.bfloat16).at[:H, :H].set(
        pooler_w.astype(jnp.bfloat16))
    pb_p = jnp.zeros((1, h_pad), jnp.float32).at[0, :H].set(
        pooler_b.astype(jnp.float32))
    cwT_p = jnp.zeros((h_pad, l_pad), jnp.bfloat16).at[:H, :L].set(
        cls_weight.T.astype(jnp.bfloat16))
    cb_p = jnp.zeros((1, l_pad), jnp.float32).at[0, :L].set(
        cls_bias.astype(jnp.float32))
    return pw_p, pb_p, cwT_p, cb_p


def baseline_classifier_forward(cls_embedding, labels, pw_p, pb_p, cwT_p, cb_p,
                                *, num_labels, b_tile=None):
    """Fused pooler + classifier + mean cross-entropy.

    pooled = tanh(cls_embedding @ pooler_w + pooler_b)   (language-model pooler, lm[1])
    logits = pooled @ cls_weight.T + cls_bias            (nn.Linear classifier)
    loss   = mean_{labels != -100} CE(logits, labels)    (nn.CrossEntropyLoss)
    Returns (loss, logits), matching baseline_model.forward(..., labels=...).
    Weights must already be padded/cast via `prepare_classifier_params`.
    """
    B, H = cls_embedding.shape
    h_pad, l_pad = cwT_p.shape
    if b_tile is None:
        b_tile = _default_b_tile(B)
    b_pad = _round_up(max(B, b_tile), b_tile)
    n_tiles = b_pad // b_tile

    # Per-call activation padding only (weight prep is hoisted).
    cls_p = jnp.zeros((b_pad, h_pad), jnp.bfloat16).at[:B, :H].set(
        cls_embedding.astype(jnp.bfloat16))
    lab_p = jnp.full((b_pad, 1), _IGNORE_INDEX, jnp.int32).at[:B, 0].set(
        labels.astype(jnp.int32))

    kernel = functools.partial(
        _fused_pooler_classifier_ce_kernel,
        num_labels=num_labels, batch=B, b_tile=b_tile)

    logits_pad, perex, valid = pl.pallas_call(
        kernel,
        out_shape=(
            jax.ShapeDtypeStruct((b_pad, l_pad), jnp.float32),
            jax.ShapeDtypeStruct((b_pad, 1), jnp.float32),
            jax.ShapeDtypeStruct((b_pad, 1), jnp.float32),
        ),
        grid=(n_tiles,),
        in_specs=[
            pl.BlockSpec((b_tile, h_pad), lambda i: (i, 0)),   # cls (streamed)
            pl.BlockSpec((h_pad, h_pad), lambda i: (0, 0)),    # pooler W (resident)
            pl.BlockSpec((1, h_pad), lambda i: (0, 0)),        # pooler b
            pl.BlockSpec((h_pad, l_pad), lambda i: (0, 0)),    # classifier W^T
            pl.BlockSpec((1, l_pad), lambda i: (0, 0)),        # classifier b
            pl.BlockSpec((b_tile, 1), lambda i: (i, 0)),       # labels
        ],
        out_specs=(
            pl.BlockSpec((b_tile, l_pad), lambda i: (i, 0)),   # lane-dense logits
            pl.BlockSpec((b_tile, 1), lambda i: (i, 0)),       # per-example loss
            pl.BlockSpec((b_tile, 1), lambda i: (i, 0)),       # valid mask
        ),
        compiler_params=pltpu.CompilerParams(
            # Each grid step owns disjoint output blocks -> batch axis is
            # fully parallel (shards across the 2 TensorCores on v7x).
            dimension_semantics=("parallel",),
            vmem_limit_bytes=_vmem_limit_bytes(b_tile, h_pad, l_pad)),
    )(cls_p, pw_p, pb_p, cwT_p, cb_p, lab_p)

    # Tiny final reduction in the wrapper (keeps the grid axis parallel).
    # Plain division: NaN when every target is ignore_index, matching torch.
    loss = jnp.sum(perex) / jnp.sum(valid)
    return loss, logits_pad[:B, :num_labels]


def stub_language_model_cls(input_ids, embed_table):
    # TODO(synk): the real `language_model` (e.g. a BERT encoder) is an
    # external black-box module; this deterministic stub only reproduces its
    # interface. Its pooler (tanh(cls @ Wp + bp) = lm[1]) is fused into the
    # Pallas kernel above to avoid an extra HBM round-trip of [B, H].
    emb = embed_table[input_ids]          # [B, S, H]
    return emb[:, 0, :]                   # CLS-token embedding [B, H]


def _reference(cls_emb, pooler_w, pooler_b, cls_weight, cls_bias, labels, L):
    """Plain-JAX reference with the same bf16-operand / f32-accumulate numerics."""
    pooled = jnp.tanh(
        jnp.dot(cls_emb.astype(jnp.bfloat16), pooler_w.astype(jnp.bfloat16),
                preferred_element_type=jnp.float32) + pooler_b)
    logits = jnp.dot(pooled.astype(jnp.bfloat16),
                     cls_weight.T.astype(jnp.bfloat16),
                     preferred_element_type=jnp.float32) + cls_bias
    lse = jax.scipy.special.logsumexp(logits, axis=-1)
    B = cls_emb.shape[0]
    loss = jnp.mean(lse - logits[jnp.arange(B), labels])
    return loss, logits


if __name__ == "__main__":
    # small shapes consistent with the forward
    B, S, H, L, V = 2, 8, 32, 4, 50   # batch, seq, hidden_size, num_labels, vocab

    key = jax.random.PRNGKey(0)
    k1, k2, k3, k4, k5, k6, k7, k8 = jax.random.split(key, 8)

    input_ids = jax.random.randint(k1, (B, S), 0, V, dtype=jnp.int32)
    labels = jax.random.randint(k2, (B,), 0, L, dtype=jnp.int32)

    # deterministic "parameters"
    embed_table = jax.random.normal(k3, (V, H), dtype=jnp.float32) * 0.02
    pooler_w = jax.random.normal(k4, (H, H), dtype=jnp.float32) * 0.02
    pooler_b = jnp.zeros((H,), dtype=jnp.float32)
    cls_weight = jax.random.normal(k5, (L, H), dtype=jnp.float32) * 0.1   # nn.Linear(H, L).weight
    cls_bias = jax.random.normal(k6, (L,), dtype=jnp.float32) * 0.01

    # one-time (hoisted) weight prep: pad + bf16 cast + classifier transpose
    pw_p, pb_p, cwT_p, cb_p = prepare_classifier_params(
        pooler_w, pooler_b, cls_weight, cls_bias)

    fwd = jax.jit(baseline_classifier_forward,
                  static_argnames=("num_labels", "b_tile"))

    # --- forward: lm -> pooled_output -> classifier -> (loss, logits) --------
    cls_emb = stub_language_model_cls(input_ids, embed_table)
    loss, logits = fwd(cls_emb, labels, pw_p, pb_p, cwT_p, cb_p, num_labels=L)
    jax.block_until_ready((loss, logits))

    loss_ref, logits_ref = _reference(
        cls_emb, pooler_w, pooler_b, cls_weight, cls_bias, labels, L)
    assert logits.shape == (B, L)
    assert jnp.allclose(logits, logits_ref, atol=1e-3, rtol=1e-3), "logits mismatch"
    assert jnp.allclose(loss, loss_ref, atol=1e-3, rtol=1e-3), "loss mismatch"

    # --- second check: multi-tile batch path with an explicit small tile -----
    B2 = 20
    cls_emb2 = jax.random.normal(k7, (B2, H), dtype=jnp.float32) * 0.05
    labels2 = jax.random.randint(k8, (B2,), 0, L, dtype=jnp.int32)
    loss2, logits2 = fwd(cls_emb2, labels2, pw_p, pb_p, cwT_p, cb_p,
                         num_labels=L, b_tile=16)
    jax.block_until_ready((loss2, logits2))

    loss2_ref, logits2_ref = _reference(
        cls_emb2, pooler_w, pooler_b, cls_weight, cls_bias, labels2, L)
    assert logits2.shape == (B2, L)
    assert jnp.allclose(logits2, logits2_ref, atol=1e-3, rtol=1e-3), "logits mismatch (multi-tile)"
    assert jnp.allclose(loss2, loss2_ref, atol=1e-3, rtol=1e-3), "loss mismatch (multi-tile)"

    print("KERNEL_OK")
</pallas_src>

<mosaic_0001>
module attributes {stable_mosaic.version = 11 : i64} {
  func.func @_fused_pooler_classifier_ce_kernel(%arg0: i32, %arg1: memref<16x128xbf16, #tpu.memory_space<vmem>>, %arg2: memref<128x128xbf16, #tpu.memory_space<vmem>>, %arg3: memref<1x128xf32, #tpu.memory_space<vmem>>, %arg4: memref<128x128xbf16, #tpu.memory_space<vmem>>, %arg5: memref<1x128xf32, #tpu.memory_space<vmem>>, %arg6: memref<16x1xi32, #tpu.memory_space<vmem>>, %arg7: memref<16x128xf32, #tpu.memory_space<vmem>>, %arg8: memref<16x1xf32, #tpu.memory_space<vmem>>, %arg9: memref<16x1xf32, #tpu.memory_space<vmem>>) attributes {dimension_semantics = [#tpu.dimension_semantics<parallel>], iteration_bounds = array<i64: 1>, scalar_prefetch = 0 : i64, scratch_operands = 0 : i64, tpu.core_type = #tpu.core_type<tc>, window_params = [{transform_indices = @transform_0, window_bounds = array<i64: 16, 128>}, {pipeline_mode = #tpu.pipeline_mode<synchronous>, transform_indices = @transform_1, window_bounds = array<i64: 128, 128>}, {pipeline_mode = #tpu.pipeline_mode<synchronous>, transform_indices = @transform_2, window_bounds = array<i64: 1, 128>}, {pipeline_mode = #tpu.pipeline_mode<synchronous>, transform_indices = @transform_3, window_bounds = array<i64: 128, 128>}, {pipeline_mode = #tpu.pipeline_mode<synchronous>, transform_indices = @transform_4, window_bounds = array<i64: 1, 128>}, {transform_indices = @transform_5, window_bounds = array<i64: 16, 1>}, {transform_indices = @transform_6, window_bounds = array<i64: 16, 128>}, {transform_indices = @transform_7, window_bounds = array<i64: 16, 1>}, {transform_indices = @transform_8, window_bounds = array<i64: 16, 1>}]} {
    %c0 = arith.constant 0 : index
    %c0_0 = arith.constant 0 : index
    %0 = vector.load %arg1[%c0, %c0_0] : memref<16x128xbf16, #tpu.memory_space<vmem>>, vector<16x128xbf16>
    %c0_1 = arith.constant 0 : index
    %c0_2 = arith.constant 0 : index
    %1 = vector.load %arg2[%c0_1, %c0_2] : memref<128x128xbf16, #tpu.memory_space<vmem>>, vector<128x128xbf16>
    %cst = arith.constant dense<0.000000e+00> : vector<16x128xf32>
    %2 = tpu.matmul %0, %1, %cst {dimension_numbers = #tpu.dot_dimension_numbers<[1], [0], [0], [1], [0, 0, 1, 1], [], []>} : vector<16x128xbf16>, vector<128x128xbf16>, vector<16x128xf32> -> vector<16x128xf32>
    %c0_3 = arith.constant 0 : index
    %c0_4 = arith.constant 0 : index
    %3 = vector.load %arg3[%c0_3, %c0_4] : memref<1x128xf32, #tpu.memory_space<vmem>>, vector<1x128xf32>
    %4 = vector.broadcast %3 : vector<1x128xf32> to vector<16x128xf32>
    %5 = arith.addf %2, %4 : vector<16x128xf32>
    %6 = math.tanh %5 : vector<16x128xf32>
    %7 = arith.truncf %6 : vector<16x128xf32> to vector<16x128xbf16>
    %c0_5 = arith.constant 0 : index
    %c0_6 = arith.constant 0 : index
    %8 = vector.load %arg4[%c0_5, %c0_6] : memref<128x128xbf16, #tpu.memory_space<vmem>>, vector<128x128xbf16>
    %cst_7 = arith.constant dense<0.000000e+00> : vector<16x128xf32>
    %9 = tpu.matmul %7, %8, %cst_7 {dimension_numbers = #tpu.dot_dimension_numbers<[1], [0], [0], [1], [0, 0, 1, 1], [], []>} : vector<16x128xbf16>, vector<128x128xbf16>, vector<16x128xf32> -> vector<16x128xf32>
    %c0_8 = arith.constant 0 : index
    %c0_9 = arith.constant 0 : index
    %10 = vector.load %arg5[%c0_8, %c0_9] : memref<1x128xf32, #tpu.memory_space<vmem>>, vector<1x128xf32>
    %11 = vector.broadcast %10 : vector<1x128xf32> to vector<16x128xf32>
    %12 = arith.addf %9, %11 : vector<16x128xf32>
    %c0_10 = arith.constant 0 : index
    %c0_11 = arith.constant 0 : index
    %13 = vector.load %arg7[%c0_10, %c0_11] : memref<16x128xf32, #tpu.memory_space<vmem>>, vector<16x128xf32>
    tpu.vector_store %arg7[%c0_10, %c0_11], %12 {strides = array<i32>} : memref<16x128xf32, #tpu.memory_space<vmem>>, vector<16x128xf32>,
    %14 = tpu.iota {dimensions = array<i32: 1>} : vector<16x128xi32>
    %c4_i32 = arith.constant 4 : i32
    %15 = vector.broadcast %c4_i32 : i32 to vector<16x128xi32>
    %16 = arith.cmpi slt, %14, %15 : vector<16x128xi32>
    %cst_12 = arith.constant 0xFF800000 : f32
    %17 = vector.broadcast %cst_12 : f32 to vector<16x128xf32>
    %18 = arith.select %16, %12, %17 : vector<16x128xi1>, vector<16x128xf32>
    %cst_13 = arith.constant dense<0xFF800000> : vector<16xf32>
    %19 = vector.multi_reduction <maximumf>, %18, %cst_13 [1] : vector<16x128xf32> to vector<16xf32>
    %20 = vector.shape_cast %19 : vector<16xf32> to vector<16x1xf32>
    %21 = vector.broadcast %20 : vector<16x1xf32> to vector<16x128xf32>
    %22 = arith.subf %18, %21 : vector<16x128xf32>
    %23 = math.exp %22 : vector<16x128xf32>
    %cst_14 = arith.constant dense<0.000000e+00> : vector<16xf32>
    %24 = vector.multi_reduction <add>, %23, %cst_14 [1] : vector<16x128xf32> to vector<16xf32>
    %25 = vector.shape_cast %24 : vector<16xf32> to vector<16x1xf32>
    %26 = math.log %25 : vector<16x1xf32>
    %27 = arith.addf %20, %26 : vector<16x1xf32>
    %c0_15 = arith.constant 0 : index
    %c0_16 = arith.constant 0 : index
    %28 = vector.load %arg6[%c0_15, %c0_16] : memref<16x1xi32, #tpu.memory_space<vmem>>, vector<16x1xi32>
    %29 = vector.broadcast %28 : vector<16x1xi32> to vector<16x128xi32>
    %30 = arith.cmpi eq, %14, %29 : vector<16x128xi32>
    %cst_17 = arith.constant 0.000000e+00 : f32
    %31 = vector.broadcast %cst_17 : f32 to vector<16x128xf32>
    %32 = arith.select %30, %12, %31 : vector<16x128xi1>, vector<16x128xf32>
    %cst_18 = arith.constant dense<0.000000e+00> : vector<16xf32>
    %33 = vector.multi_reduction <add>, %32, %cst_18 [1] : vector<16x128xf32> to vector<16xf32>
    %34 = vector.shape_cast %33 : vector<16xf32> to vector<16x1xf32>
    %35 = tpu.iota {dimensions = array<i32: 0>} : vector<16x1xi32>
    %c16_i32 = arith.constant 16 : i32
    %36 = arith.muli %arg0, %c16_i32 : i32
    %37 = vector.broadcast %36 : i32 to vector<16x1xi32>
    %38 = arith.addi %35, %37 : vector<16x1xi32>
    %c2_i32 = arith.constant 2 : i32
    %39 = vector.broadcast %c2_i32 : i32 to vector<16x1xi32>
    %40 = arith.cmpi slt, %38, %39 : vector<16x1xi32>
    %c-100_i32 = arith.constant -100 : i32
    %41 = vector.broadcast %c-100_i32 : i32 to vector<16x1xi32>
    %42 = arith.cmpi ne, %28, %41 : vector<16x1xi32>
    %43 = arith.andi %40, %42 : vector<16x1xi1>
    %44 = arith.subf %27, %34 : vector<16x1xf32>
    %cst_19 = arith.constant 0.000000e+00 : f32
    %45 = vector.broadcast %cst_19 : f32 to vector<16x1xf32>
    %46 = arith.select %43, %44, %45 : vector<16x1xi1>, vector<16x1xf32>
    %c0_20 = arith.constant 0 : index
    %c0_21 = arith.constant 0 : index
    %47 = vector.load %arg8[%c0_20, %c0_21] : memref<16x1xf32, #tpu.memory_space<vmem>>, vector<16x1xf32>
    tpu.vector_store %arg8[%c0_20, %c0_21], %46 {strides = array<i32>} : memref<16x1xf32, #tpu.memory_space<vmem>>, vector<16x1xf32>,
    %48 = arith.extui %43 : vector<16x1xi1> to vector<16x1xi32>
    %49 = arith.sitofp %48 : vector<16x1xi32> to vector<16x1xf32>
    %c0_22 = arith.constant 0 : index
    %c0_23 = arith.constant 0 : index
    %50 = vector.load %arg9[%c0_22, %c0_23] : memref<16x1xf32, #tpu.memory_space<vmem>>, vector<16x1xf32>
    tpu.vector_store %arg9[%c0_22, %c0_23], %49 {strides = array<i32>} : memref<16x1xf32, #tpu.memory_space<vmem>>, vector<16x1xf32>,
    return
  }
  func.func @transform_0(%arg0: i32) -> (i32, i32) {
    %c0_i32 = arith.constant 0 : i32
    %c0_i32_0 = arith.constant 0 : i32
    return %arg0, %c0_i32 : i32, i32
  }
  func.func @transform_1(%arg0: i32) -> (i32, i32) {
    %c0_i32 = arith.constant 0 : i32
    %c0_i32_0 = arith.constant 0 : i32
    %c0_i32_1 = arith.constant 0 : i32
    return %c0_i32, %c0_i32_0 : i32, i32
  }
  func.func @transform_2(%arg0: i32) -> (i32, i32) {
    %c0_i32 = arith.constant 0 : i32
    %c0_i32_0 = arith.constant 0 : i32
    %c0_i32_1 = arith.constant 0 : i32
    return %c0_i32, %c0_i32_0 : i32, i32
  }
  func.func @transform_3(%arg0: i32) -> (i32, i32) {
    %c0_i32 = arith.constant 0 : i32
    %c0_i32_0 = arith.constant 0 : i32
    %c0_i32_1 = arith.constant 0 : i32
    return %c0_i32, %c0_i32_0 : i32, i32
  }
  func.func @transform_4(%arg0: i32) -> (i32, i32) {
    %c0_i32 = arith.constant 0 : i32
    %c0_i32_0 = arith.constant 0 : i32
    %c0_i32_1 = arith.constant 0 : i32
    return %c0_i32, %c0_i32_0 : i32, i32
  }
  func.func @transform_5(%arg0: i32) -> (i32, i32) {
    %c0_i32 = arith.constant 0 : i32
    %c0_i32_0 = arith.constant 0 : i32
    return %arg0, %c0_i32 : i32, i32
  }
  func.func @transform_6(%arg0: i32) -> (i32, i32) {
    %c0_i32 = arith.constant 0 : i32
    %c0_i32_0 = arith.constant 0 : i32
    return %arg0, %c0_i32 : i32, i32
  }
  func.func @transform_7(%arg0: i32) -> (i32, i32) {
    %c0_i32 = arith.constant 0 : i32
    %c0_i32_0 = arith.constant 0 : i32
    return %arg0, %c0_i32 : i32, i32
  }
  func.func @transform_8(%arg0: i32) -> (i32, i32) {
    %c0_i32 = arith.constant 0 : i32
    %c0_i32_0 = arith.constant 0 : i32
    return %arg0, %c0_i32 : i32, i32
  }
}

</mosaic_0001>

<llo_original>
// kernel: baseline_classifier_forward.1
$region0: #{baseline_classifier_forward.1}
  #allocation0 [shape = 'u32[]', space=smem, size = 0x4, offset = 0x4, fixed_abs, tag = 'smem constant byte address 0x4 - core index']
  #allocation1 [shape = 'u32[144,128]{1,0:T(1,128)}', space=vmem, size = 0x12000, scoped, tag = 'internal scratch']
  %s0 = inlined_call_operand.vmem [shape: bf16[16,128], index: 0, kind: input, shape index: {}]
  %s1 = inlined_call_operand.hbm [shape: bf16[128,128], index: 1, kind: input, shape index: {}]
  %s2 = inlined_call_operand.vmem [shape: f32[1,128], index: 2, kind: input, shape index: {}]
  %s3 = inlined_call_operand.hbm [shape: bf16[128,128], index: 3, kind: input, shape index: {}]
  %s4 = inlined_call_operand.vmem [shape: f32[1,128], index: 4, kind: input, shape index: {}]
  %s5 = inlined_call_operand.vmem [shape: s32[16,1], index: 5, kind: input, shape index: {}]
  %s6 = inlined_call_operand.vmem [shape: f32[16,128], index: 6, kind: output, shape index: {0}]
  %s7 = inlined_call_operand.vmem [shape: f32[16,1], index: 7, kind: output, shape index: {1}]
  %s8 = inlined_call_operand.vmem [shape: f32[16,1], index: 8, kind: output, shape index: {2}]
  %9 = xla_tuple %s6, %s7, %s8
  %s10 = sld [smem:[#allocation0]]
  $region58: #{baseline_classifier_forward.1} parent=0
    _
  %s12 = ssub.s32 1, %s10
  %s13 = scalar_select 0, %s12, %s10
  $region1: #{baseline_classifier_forward.1} parent=0
    #allocation2 [shape = 'u8[32768]{0}', space=vmem, size = 0x8000, scoped, tag = 'input window, operand 1, single buffered']
    #allocation3 [shape = 's32[1]{0}', space=sflag, size = 0x4, scoped, tag = 'scoped memory for baseline_classifier_forward.1']
    #allocation4 [shape = 'u8[32768]{0}', space=vmem, size = 0x8000, scoped, tag = 'input window, operand 3, single buffered']
    #allocation5 [shape = 's32[1]{0}', space=sflag, size = 0x4, scoped, tag = 'scoped memory for baseline_classifier_forward.1']
    %14 = vsyncpa [#allocation3], 0
    %15 = vsyncpa [#allocation5], 0
    // Predicated region
    $region2: #{baseline_classifier_forward.1} parent=1 // pred_check
      _
    $region3: #{baseline_classifier_forward.1} parent=1 // pred_check_branch
      %17 = sbr.rel (0) target = $region5
    $region4: #{baseline_classifier_forward.1} parent=1 // pred_region
      _
    $region5: #{baseline_classifier_forward.1} parent=1 // pred_fallthru
      _
    // Predicated region
    $region6: #{baseline_classifier_forward.1} parent=1 // pred_check
      _
    $region7: #{baseline_classifier_forward.1} parent=1 // pred_check_branch
      %19 = sbr.rel (0) target = $region9
    $region8: #{baseline_classifier_forward.1} parent=1 // pred_region
      %s21 = ssub.s32 1024, 1024
      %22 = vsyncadd [#allocation3], %s21
      %s23 = sshll.u32 [#allocation2], 4
      %s24 = int_to_ptr.vmem [resolvable:$true] %s23
      %29 = dma.hbm_to_vmem [thread:$0]  %s1, 1024, %s24, [#allocation3], 64, 64, 4
    $region9: #{baseline_classifier_forward.1} parent=1 // pred_fallthru
      _
    // Predicated region
    $region10: #{baseline_classifier_forward.1} parent=1 // pred_check
      _
    $region11: #{baseline_classifier_forward.1} parent=1 // pred_check_branch
      %31 = sbr.rel (0) target = $region13
    $region12: #{baseline_classifier_forward.1} parent=1 // pred_region
      _
    $region13: #{baseline_classifier_forward.1} parent=1 // pred_fallthru
      _
    // Predicated region
    $region14: #{baseline_classifier_forward.1} parent=1 // pred_check
      _
    $region15: #{baseline_classifier_forward.1} parent=1 // pred_check_branch
      %33 = sbr.rel (0) target = $region17
    $region16: #{baseline_classifier_forward.1} parent=1 // pred_region
      %s35 = ssub.s32 1024, 1024
      %36 = vsyncadd [#allocation5], %s35
      %s37 = sshll.u32 [#allocation4], 4
      %s38 = int_to_ptr.vmem [resolvable:$true] %s37
      %43 = dma.hbm_to_vmem [thread:$0]  %s3, 1024, %s38, [#allocation5], 64, 64, 4
    $region17: #{baseline_classifier_forward.1} parent=1 // pred_fallthru
      _
    // Predicated region
    $region18: #{baseline_classifier_forward.1} parent=1 // pred_check
      _
    $region19: #{baseline_classifier_forward.1} parent=1 // pred_check_branch
      %45 = sbr.rel (0) target = $region21
    $region20: #{baseline_classifier_forward.1} parent=1 // pred_region
      _
    $region21: #{baseline_classifier_forward.1} parent=1 // pred_fallthru
      _
    // Predicated region
    $region22: #{baseline_classifier_forward.1} parent=1 // pred_check
      _
    $region23: #{baseline_classifier_forward.1} parent=1 // pred_check_branch
      %47 = sbr.rel (0) target = $region25
    $region24: #{baseline_classifier_forward.1} parent=1 // pred_region
      _
    $region25: #{baseline_classifier_forward.1} parent=1 // pred_fallthru
      _
    // Predicated region
    $region26: #{baseline_classifier_forward.1} parent=1 // pred_check
      _
    $region27: #{baseline_classifier_forward.1} parent=1 // pred_check_branch
      %49 = sbr.rel (0) target = $region29
    $region28: #{baseline_classifier_forward.1} parent=1 // pred_region
      %50 = dma.done [#allocation3], 1024
    $region29: #{baseline_classifier_forward.1} parent=1 // pred_fallthru
      _
    // Predicated region
    $region30: #{baseline_classifier_forward.1} parent=1 // pred_check
      _
    $region31: #{baseline_classifier_forward.1} parent=1 // pred_check_branch
      %52 = sbr.rel (0) target = $region33
    $region32: #{baseline_classifier_forward.1} parent=1 // pred_region
      %53 = dma.done [#allocation5], 1024
    $region33: #{baseline_classifier_forward.1} parent=1 // pred_fallthru
      _
    %v55 = vld [vmem:[%s0] sm:$0xf]
    %v56 = vld [vmem:[%s0 + $0x4] sm:$0xf]
    %v57 = vld [vmem:[#allocation2] sm:$0xf]
    %v58 = vld [vmem:[#allocation2 + $0x4] sm:$0xf]
    %v59 = vld [vmem:[#allocation2 + $0x8] sm:$0xf]
    %v60 = vld [vmem:[#allocation2 + $0xc] sm:$0xf]
    %v61 = vld [vmem:[#allocation2 + $0x10] sm:$0xf]
    %v62 = vld [vmem:[#allocation2 + $0x14] sm:$0xf]
    %v63 = vld [vmem:[#allocation2 + $0x18] sm:$0xf]
    %v64 = vld [vmem:[#allocation2 + $0x1c] sm:$0xf]
    %v65 = vld [vmem:[#allocation2 + $0x20] sm:$0xf]
    %v66 = vld [vmem:[#allocation2 + $0x24] sm:$0xf]
    %v67 = vld [vmem:[#allocation2 + $0x28] sm:$0xf]
    %v68 = vld [vmem:[#allocation2 + $0x2c] sm:$0xf]
    %v69 = vld [vmem:[#allocation2 + $0x30] sm:$0xf]
    %v70 = vld [vmem:[#allocation2 + $0x34] sm:$0xf]
    %v71 = vld [vmem:[#allocation2 + $0x38] sm:$0xf]
    %v72 = vld [vmem:[#allocation2 + $0x3c] sm:$0xf]
    %v73 = vld [vmem:[%s2] sm:$0x1]
    %v75 = vlaneseq
    %v76 = vshrl.u32 %v75, 7
    %v77 = vsub.s32 0, %v76
    %v78 = vrot.slane %v73, %v77
    %v82 = vunpack.c.l.b16 %v55
    %v83 = vunpack.c.l.b16 %v56
    %v84 = vpack.c.b16 %v83, %v82
    %v102 = vunpack.c.l.b16 %v57
    %v103 = vunpack.c.l.b16 %v58
    %v104 = vunpack.c.l.b16 %v59
    %v105 = vunpack.c.l.b16 %v60
    %v106 = vunpack.c.l.b16 %v61
    %v107 = vunpack.c.l.b16 %v62
    %v108 = vunpack.c.l.b16 %v63
    %v109 = vunpack.c.l.b16 %v64
    %v110 = vunpack.c.l.b16 %v65
    %v111 = vunpack.c.l.b16 %v66
    %v112 = vunpack.c.l.b16 %v67
    %v113 = vunpack.c.l.b16 %v68
    %v114 = vunpack.c.l.b16 %v69
    %v115 = vunpack.c.l.b16 %v70
    %v116 = vunpack.c.l.b16 %v71
    %v117 = vunpack.c.l.b16 %v72
    %v118 = vpack.c.b16 %v103, %v102
    %v119 = vpack.c.b16 %v105, %v104
    %v120 = vpack.c.b16 %v107, %v106
    %v121 = vpack.c.b16 %v109, %v108
    %v122 = vpack.c.b16 %v111, %v110
    %v123 = vpack.c.b16 %v113, %v112
    %v124 = vpack.c.b16 %v115, %v114
    %v125 = vpack.c.b16 %v117, %v116
    %134 = vmatprep.subr.bf16.mxu0 0
    %135 = vmatpush1.bf16.msra.mxu0 %v118
    %136 = vmatprep.subr.bf16.mxu0 0
    %137 = vmatpush1.bf16.msra.mxu0 %v119
    %138 = vmatprep.subr.bf16.mxu0 0
    %139 = vmatpush1.bf16.msra.mxu0 %v120
    %140 = vmatprep.subr.bf16.mxu0 0
    %141 = vmatpush1.bf16.msra.mxu0 %v121
    %142 = vmatprep.subr.bf16.mxu0 0
    %143 = vmatpush1.bf16.msra.mxu0 %v122
    %144 = vmatprep.subr.bf16.mxu0 0
    %145 = vmatpush1.bf16.msra.mxu0 %v123
    %146 = vmatprep.subr.bf16.mxu0 0
    %147 = vmatpush1.bf16.msra.mxu0 %v124
    %148 = vmatprep.subr.bf16.mxu0 0
    %149 = vmatpush1.bf16.msra.mxu0 %v125
    %150 = vmatprep.subr.bf16.mxu0 0
    %151 = vmatpush1.bf16.msra.mxu0 0
    %152 = vmatprep.subr.bf16.mxu0 0
    %153 = vmatpush1.bf16.msra.mxu0 0
    %154 = vmatprep.subr.bf16.mxu0 0
    %155 = vmatpush1.bf16.msra.mxu0 0
    %156 = vmatprep.subr.bf16.mxu0 0
    %157 = vmatpush1.bf16.msra.mxu0 0
    %158 = vmatprep.subr.bf16.mxu0 0
    %159 = vmatpush1.bf16.msra.mxu0 0
    %160 = vmatprep.subr.bf16.mxu0 0
    %161 = vmatpush1.bf16.msra.mxu0 0
    %162 = vmatprep.subr.bf16.mxu0 0
    %163 = vmatpush1.bf16.msra.mxu0 0
    %164 = vmatprep.subr.bf16.mxu0 0
    %165 = vmatpush1.bf16.msra.mxu0 0
    %166 = vmatprep.mubr.bf16.mxu0 0
    %167 = vmatmul.mubr.bf16.gmra.mrb[0].mxu0 %v84
    %v168 = vpop.f32.mrb[0].mxu0
    %v169 = vadd.f32 %v78, %v168
    %v170 = vpop.f32.mrb[0].mxu0
    %v171 = vpop.f32.mrb[0].mxu0
    %v172 = vadd.f32 %v78, %v171
    %v173 = vpop.f32.mrb[0].mxu0
    %174 = vdwg.mxu0
    %v175 = vtanh.pop %v169
    %v176 = vtanh.pop %v172
    %v177 = vpack.c.bf16 %v176, %v175
    %v178 = vld [vmem:[#allocation4] sm:$0xf]
    %v179 = vld [vmem:[#allocation4 + $0x4] sm:$0xf]
    %v180 = vld [vmem:[#allocation4 + $0x8] sm:$0xf]
    %v181 = vld [vmem:[#allocation4 + $0xc] sm:$0xf]
    %v182 = vld [vmem:[#allocation4 + $0x10] sm:$0xf]
    %v183 = vld [vmem:[#allocation4 + $0x14] sm:$0xf]
    %v184 = vld [vmem:[#allocation4 + $0x18] sm:$0xf]
    %v185 = vld [vmem:[#allocation4 + $0x1c] sm:$0xf]
    %v186 = vld [vmem:[#allocation4 + $0x20] sm:$0xf]
    %v187 = vld [vmem:[#allocation4 + $0x24] sm:$0xf]
    %v188 = vld [vmem:[#allocation4 + $0x28] sm:$0xf]
    %v189 = vld [vmem:[#allocation4 + $0x2c] sm:$0xf]
    %v190 = vld [vmem:[#allocation4 + $0x30] sm:$0xf]
    %v191 = vld [vmem:[#allocation4 + $0x34] sm:$0xf]
    %v192 = vld [vmem:[#allocation4 + $0x38] sm:$0xf]
    %v193 = vld [vmem:[#allocation4 + $0x3c] sm:$0xf]
    %v194 = vld [vmem:[%s4] sm:$0x1]
    %v196 = vlaneseq
    %v197 = vshrl.u32 %v196, 7
    %v198 = vsub.s32 0, %v197
    %v199 = vrot.slane %v194, %v198
    %v217 = vunpack.c.l.b16 %v178
    %v218 = vunpack.c.l.b16 %v179
    %v219 = vunpack.c.l.b16 %v180
    %v220 = vunpack.c.l.b16 %v181
    %v221 = vunpack.c.l.b16 %v182
    %v222 = vunpack.c.l.b16 %v183
    %v223 = vunpack.c.l.b16 %v184
    %v224 = vunpack.c.l.b16 %v185
    %v225 = vunpack.c.l.b16 %v186
    %v226 = vunpack.c.l.b16 %v187
    %v227 = vunpack.c.l.b16 %v188
    %v228 = vunpack.c.l.b16 %v189
    %v229 = vunpack.c.l.b16 %v190
    %v230 = vunpack.c.l.b16 %v191
    %v231 = vunpack.c.l.b16 %v192
    %v232 = vunpack.c.l.b16 %v193
    %v233 = vpack.c.b16 %v218, %v217
    %v234 = vpack.c.b16 %v220, %v219
    %v235 = vpack.c.b16 %v222, %v221
    %v236 = vpack.c.b16 %v224, %v223
    %v237 = vpack.c.b16 %v226, %v225
    %v238 = vpack.c.b16 %v228, %v227
    %v239 = vpack.c.b16 %v230, %v229
    %v240 = vpack.c.b16 %v232, %v231
    %249 = vmatprep.subr.bf16.mxu0 0
    %250 = vmatpush1.bf16.msra.mxu0 %v233
    %251 = vmatprep.subr.bf16.mxu0 0
    %252 = vmatpush1.bf16.msra.mxu0 %v234
    %253 = vmatprep.subr.bf16.mxu0 0
    %254 = vmatpush1.bf16.msra.mxu0 %v235
    %255 = vmatprep.subr.bf16.mxu0 0
    %256 = vmatpush1.bf16.msra.mxu0 %v236
    %257 = vmatprep.subr.bf16.mxu0 0
    %258 = vmatpush1.bf16.msra.mxu0 %v237
    %259 = vmatprep.subr.bf16.mxu0 0
    %260 = vmatpush1.bf16.msra.mxu0 %v238
    %261 = vmatprep.subr.bf16.mxu0 0
    %262 = vmatpush1.bf16.msra.mxu0 %v239
    %263 = vmatprep.subr.bf16.mxu0 0
    %264 = vmatpush1.bf16.msra.mxu0 %v240
    %265 = vmatprep.subr.bf16.mxu0 0
    %266 = vmatpush1.bf16.msra.mxu0 0
    %267 = vmatprep.subr.bf16.mxu0 0
    %268 = vmatpush1.bf16.msra.mxu0 0
    %269 = vmatprep.subr.bf16.mxu0 0
    %270 = vmatpush1.bf16.msra.mxu0 0
    %271 = vmatprep.subr.bf16.mxu0 0
    %272 = vmatpush1.bf16.msra.mxu0 0
    %273 = vmatprep.subr.bf16.mxu0 0
    %274 = vmatpush1.bf16.msra.mxu0 0
    %275 = vmatprep.subr.bf16.mxu0 0
    %276 = vmatpush1.bf16.msra.mxu0 0
    %277 = vmatprep.subr.bf16.mxu0 0
    %278 = vmatpush1.bf16.msra.mxu0 0
    %279 = vmatprep.subr.bf16.mxu0 0
    %280 = vmatpush1.bf16.msra.mxu0 0
    %281 = vmatprep.mubr.bf16.mxu0 0
    %282 = vmatmul.mubr.bf16.gmra.mrb[0].mxu0 %v177
    %v283 = vpop.f32.mrb[0].mxu0
    %v284 = vadd.f32 %v199, %v283
    %v285 = vpop.f32.mrb[0].mxu0
    %v286 = vpop.f32.mrb[0].mxu0
    %v287 = vadd.f32 %v199, %v286
    %v288 = vpop.f32.mrb[0].mxu0
    %289 = vdwg.mxu0
    %290 = vst [vmem:[%s6] sm:$0xff] %v284
    %291 = vst [vmem:[%s6 + $0x8] sm:$0xff] %v287
    %v292 = vlaneseq
    %v293 = vand.u32 %v292, 127
    %vm294 = vcmp.lt.s32.totalorder %v293, 4
    %v295 = vsel %vm294, %v284, -inf
    %v296 = vsel %vm294, %v287, -inf
    %297 = vmax.xlane.f32.xlu0 %v295
    %v298 = vpop.xlane.xlu0 %297
    %299 = vmax.xlane.f32.xlu0 %v296
    %v300 = vpop.xlane.xlu0 %299
    %v301 = vsub.f32 %v295, %v298
    %v302 = vsub.f32 %v296, %v300
    %v303 = vmul.f32 %v301, 1.442695
    %v304 = vpow.pop %v303
    %v305 = vmul.f32 %v302, 1.442695
    %v306 = vpow.pop %v305
    %307 = vadd.xlane.f32.xlu0 %v304
    %v308 = vpop.xlane.xlu0 %307
    %309 = vadd.xlane.f32.xlu0 %v306
    %v310 = vpop.xlane.xlu0 %309
    %v311 = vlog2.pop %v308
    %v312 = vmul.f32 %v311, 0.6931472
    %v313 = vlog2.pop %v310
    %v314 = vmul.f32 %v313, 0.6931472
    %v315 = vadd.f32 %v298, %v312
    %v316 = vadd.f32 %v300, %v314
    %v317 = vld [vmem:[%s5] sm:$0xff]
    %v318 = vld [vmem:[%s5 + $0x8] sm:$0xff]
    %319 = vset.pattern.permute.xlu0 0
    %320 = vperm.xlu0 %319, %v317
    %v321 = vpop.permute.xlu0 %320
    %322 = vset.pattern.permute.xlu0 0
    %323 = vperm.xlu0 %322, %v318
    %v324 = vpop.permute.xlu0 %323
    %vm325 = vcmp.eq.s32.totalorder %v293, %v321
    %vm326 = vcmp.eq.s32.totalorder %v293, %v324
    %v327 = vsel %vm325, %v284, 0.0
    %v328 = vsel %vm326, %v287, 0.0
    %329 = vadd.xlane.f32.xlu0 %v327
    %v330 = vpop.xlane.xlu0 %329
    %331 = vadd.xlane.f32.xlu0 %v328
    %v332 = vpop.xlane.xlu0 %331
    %v333 = vlaneseq
    %v334 = vshrl.u32 %v333, 7
    %v335 = vadd.s32 %v334, 8
    %s336 = smul.u32 0, 16
    %v337 = vstv %s336
    %v338 = vadd.s32 %v334, %v337
    %v339 = vadd.s32 %v335, %v337
    %vm340 = vcmp.lt.s32.totalorder %v338, 2
    %vm341 = vcmp.lt.s32.totalorder %v339, 2
    %vm342 = vcmp.ne.s32.totalorder %v317, 4294967196
    %vm343 = vcmp.ne.s32.totalorder %v318, 4294967196
    %vm344 = vmand %vm340, %vm342
    %vm345 = vmand %vm341, %vm343
    %v346 = vsub.f32 %v315, %v330
    %v347 = vsub.f32 %v316, %v332
    %v348 = vsel %vm344, %v346, 0.0
    %v349 = vsel %vm345, %v347, 0.0
    %vm350 = vcmask 7168
    %351 = vst.msk [vmem:[%s7] sm:$0xff] %vm350, %v348
    %352 = vst.msk [vmem:[%s7 + $0x8] sm:$0xff] %vm350, %v349
    %v353 = vsel %vm344, 1, 0
    %v354 = vsel %vm345, 1, 0
    %v355 = vcvt.s32.f32 %v353
    %v356 = vcvt.s32.f32 %v354
    %357 = vst.msk [vmem:[%s8] sm:$0xff] %vm350, %v355
    %358 = vst.msk [vmem:[%s8 + $0x8] sm:$0xff] %vm350, %v356
    // Predicated region
    $region34: #{baseline_classifier_forward.1} parent=1 // pred_check
      _
    $region35: #{baseline_classifier_forward.1} parent=1 // pred_check_branch
      %360 = sbr.rel (0) target = $region37
    $region36: #{baseline_classifier_forward.1} parent=1 // pred_region
      _
    $region37: #{baseline_classifier_forward.1} parent=1 // pred_fallthru
      _
    // Predicated region
    $region38: #{baseline_classifier_forward.1} parent=1 // pred_check
      _
    $region39: #{baseline_classifier_forward.1} parent=1 // pred_check_branch
      %362 = sbr.rel (0) target = $region41
    $region40: #{baseline_classifier_forward.1} parent=1 // pred_region
      _
    $region41: #{baseline_classifier_forward.1} parent=1 // pred_fallthru
      _
    // Predicated region
    $region42: #{baseline_classifier_forward.1} parent=1 // pred_check
      _
    $region43: #{baseline_classifier_forward.1} parent=1 // pred_check_branch
      %364 = sbr.rel (0) target = $region45
    $region44: #{baseline_classifier_forward.1} parent=1 // pred_region
      _
    $region45: #{baseline_classifier_forward.1} parent=1 // pred_fallthru
      _
    // Predicated region
    $region46: #{baseline_classifier_forward.1} parent=1 // pred_check
      _
    $region47: #{baseline_classifier_forward.1} parent=1 // pred_check_branch
      %366 = sbr.rel (0) target = $region49
    $region48: #{baseline_classifier_forward.1} parent=1 // pred_region
      _
    $region49: #{baseline_classifier_forward.1} parent=1 // pred_fallthru
      _
    // Predicated region
    $region50: #{baseline_classifier_forward.1} parent=1 // pred_check
      _
    $region51: #{baseline_classifier_forward.1} parent=1 // pred_check_branch
      %368 = sbr.rel (0) target = $region53
    $region52: #{baseline_classifier_forward.1} parent=1 // pred_region
      _
    $region53: #{baseline_classifier_forward.1} parent=1 // pred_fallthru
      _
    // Predicated region
    $region54: #{baseline_classifier_forward.1} parent=1 // pred_check
      _
    $region55: #{baseline_classifier_forward.1} parent=1 // pred_check_branch
      %370 = sbr.rel (0) target = $region57
    $region56: #{baseline_classifier_forward.1} parent=1 // pred_region
      _
    $region57: #{baseline_classifier_forward.1} parent=1 // pred_fallthru
      _
    %371 = vsyncpa [#allocation3], 1
    %372 = vsyncpa [#allocation5], 1

</llo_original>
